<compile_context>
chip_gen: v7x
topology: tpu7x:2x2x1
jax: 0.10.0
libtpu: 0.0.40
codegen_flags: <defaults>
</compile_context>

<pallas_src>
import jax
import jax.numpy as jnp
from jax.experimental import pallas as pl
from jax.experimental.pallas import tpu as pltpu


def _round_up(v, m):
    return ((v + m - 1) // m) * m


def _round_down(v, m):
    return (v // m) * m


def _embedding_kernel(x_ref, wproj_ref, wgt0_ref, bgt0_ref,
                      wgt1_ref, bgt1_ref, o_ref):
    # x_ref:     (TN, E)       f32 tile of flattened inputs (cast here)
    # wproj_ref: (E, Hp)       bf16 projection weight (pre-transposed: x @ W)
    # wgt*_ref:  (Hp, 2*Hp)    bf16 fused [gate | transform] weights
    # bgt*_ref:  (1, 2*Hp)     f32 fused [gate | transform] biases
    # o_ref:     (TN, Hp)
    Hp = o_ref.shape[-1]

    # In-kernel f32 -> bf16 cast (VPU pack is free filler under the MXU).
    xb = x_ref[...].astype(jnp.bfloat16)

    # Projection (no bias): bf16 x bf16 -> f32 accumulate on the MXU.
    h = jnp.dot(xb, wproj_ref[...], preferred_element_type=jnp.float32)

    # Two highway layers, each a single fused gate+transform matmul.
    for wgt_ref, bgt_ref in ((wgt0_ref, bgt0_ref), (wgt1_ref, bgt1_ref)):
        gt = jnp.dot(h.astype(jnp.bfloat16), wgt_ref[...],
                     preferred_element_type=jnp.float32) + bgt_ref[...]
        g = jax.nn.sigmoid(gt[:, :Hp])     # lane-aligned split (Hp % 128 == 0)
        t = jnp.maximum(gt[:, Hp:], 0.0)
        h = h + g * (t - h)                # g*t + (1-g)*h, one fewer multiply

    o_ref[...] = h.astype(o_ref.dtype)


def embedding_forward(x, packed, *, tile_n=None, out_dtype=None):
    """x: (batch, seq, E) float32.  packed: see pack_params().  Returns
    (batch, seq, H) in out_dtype (defaults to x.dtype)."""
    B, S, E = x.shape
    H = packed["hidden_size"]
    H_pad = packed["w_proj"].shape[1]      # multiple of 128
    N = B * S
    out_dtype = out_dtype if out_dtype is not None else x.dtype
    out_itemsize = jnp.dtype(out_dtype).itemsize

    # x stays f32; cast happens inside the kernel (single HBM read of x).
    x2d = x.reshape(N, E)

    # --- per-chip VMEM policy ---
    try:
        vmem_cap = int(pltpu.get_tpu_info().vmem_capacity_bytes)
    except Exception:
        vmem_cap = 64 << 20
    if vmem_cap >= (128 << 20):            # v5e / v6e: 128 MiB parts
        vmem_ceiling = 100 << 20
        tile_cap = 2048
    else:                                  # v7x: 64 MiB per TC
        vmem_ceiling = 48 << 20
        tile_cap = 512

    # Resident weights (bf16) + biases (f32), single-buffered.
    weight_bytes = ((E * H_pad + 2 * H_pad * 2 * H_pad) * 2
                    + 2 * (2 * H_pad) * 4)

    def footprint(tn):
        x_tiles = 2 * tn * E * 4                    # double-buffered f32 x
        o_tiles = 2 * tn * H_pad * out_itemsize     # double-buffered output
        interm = tn * 5 * H_pad * 4                 # h, gt(=2H), g, t in f32
        return weight_bytes + x_tiles + o_tiles + interm

    if tile_n is None:
        if N <= 4 * 128:
            # Tiny problem: one-or-few steps, rows padded to bf16 sublane
            # packing (16) and capped at 128.
            tile_n = min(_round_up(max(N, 8), 16), 128)
        else:
            # >= 4 grid steps total (>= 2 per TC on v7x) so BlockSpec
            # double-buffering overlaps DMA with compute on both cores.
            tile_n = min(tile_cap, max(128, _round_down(N // 4, 128)))
        # Shrink if tiles + resident weights + f32 temporaries overflow VMEM.
        while tile_n > 128 and footprint(tile_n) > vmem_ceiling - (4 << 20):
            tile_n = max(128, _round_down(tile_n // 2, 128))
        tile_n = max(tile_n, 16)

    grid = (pl.cdiv(N, tile_n),)
    # NOTE: when N % tile_n != 0 the last block is partial; Pallas masks the
    # out-of-range output rows and the garbage rows of `h` are never read.

    row_in = pl.BlockSpec((tile_n, E), lambda i: (i, 0))
    row_out = pl.BlockSpec((tile_n, H_pad), lambda i: (i, 0))
    # Whole-array, single-buffered VMEM residency for weights/biases.
    resident = lambda: pl.BlockSpec(memory_space=pltpu.MemorySpace.VMEM)

    vmem_limit = int(min(vmem_ceiling,
                         max(32 << 20, footprint(tile_n) + (4 << 20))))

    out2d = pl.pallas_call(
        _embedding_kernel,
        out_shape=jax.ShapeDtypeStruct((N, H_pad), out_dtype),
        grid_spec=pltpu.PrefetchScalarGridSpec(
            num_scalar_prefetch=0,
            grid=grid,
            in_specs=[
                row_in,
                resident(),               # w_proj
                resident(), resident(),   # wgt0, bgt0
                resident(), resident(),   # wgt1, bgt1
            ],
            out_specs=row_out,
        ),
        compiler_params=pltpu.CompilerParams(
            dimension_semantics=("parallel",),
            vmem_limit_bytes=vmem_limit),
    )(x2d,
      packed["w_proj"],
      packed["wgt0"], packed["bgt0"],
      packed["wgt1"], packed["bgt1"])

    if H_pad != H:
        out2d = out2d[:, :H]
    return out2d.reshape(B, S, H)


def init_params(key, embedding_size, hidden_size):
    """Deterministic synthetic parameters, f32, stored pre-transposed so the
    math is x @ W (matching PyTorch's x @ W^T)."""
    keys = jax.random.split(key, 9)
    scale_e = 1.0 / jnp.sqrt(embedding_size)
    scale_h = 1.0 / jnp.sqrt(hidden_size)
    return {
        "w_proj": jax.random.uniform(keys[0], (embedding_size, hidden_size),
                                     jnp.float32, -scale_e, scale_e),
        "wg0": jax.random.uniform(keys[1], (hidden_size, hidden_size),
                                  jnp.float32, -scale_h, scale_h),
        "bg0": jax.random.uniform(keys[2], (1, hidden_size),
                                  jnp.float32, -scale_h, scale_h),
        "wt0": jax.random.uniform(keys[3], (hidden_size, hidden_size),
                                  jnp.float32, -scale_h, scale_h),
        "bt0": jax.random.uniform(keys[4], (1, hidden_size),
                                  jnp.float32, -scale_h, scale_h),
        "wg1": jax.random.uniform(keys[5], (hidden_size, hidden_size),
                                  jnp.float32, -scale_h, scale_h),
        "bg1": jax.random.uniform(keys[6], (1, hidden_size),
                                  jnp.float32, -scale_h, scale_h),
        "wt1": jax.random.uniform(keys[7], (hidden_size, hidden_size),
                                  jnp.float32, -scale_h, scale_h),
        "bt1": jax.random.uniform(keys[8], (1, hidden_size),
                                  jnp.float32, -scale_h, scale_h),
    }


def pack_params(p):
    """Kernel layout: bf16 weights, gate|transform fused along the out axis,
    H padded to a multiple of 128 (lane-dense stores / aligned gt split),
    biases kept in f32 (added after the f32-accumulated matmul).

    Zero padding is exact: padded h columns stay 0 through the highway
    layers (g=sigmoid(0)=0.5, t=relu(0)=0 -> h stays 0) and padded weight
    rows contribute nothing to the real columns.
    """
    bf = jnp.bfloat16
    H = p["w_proj"].shape[1]
    H_pad = _round_up(H, 128)

    def pad_cols(w, n):
        return jnp.pad(w, ((0, 0), (0, n - w.shape[1])))

    def pad_rows(w, n):
        return jnp.pad(w, ((0, n - w.shape[0]), (0, 0)))

    def fuse(wg, wt, bg, bt):
        wg = pad_rows(pad_cols(wg, H_pad), H_pad)
        wt = pad_rows(pad_cols(wt, H_pad), H_pad)
        bg = pad_cols(bg, H_pad)
        bt = pad_cols(bt, H_pad)
        return (jnp.concatenate([wg, wt], axis=1).astype(bf),
                jnp.concatenate([bg, bt], axis=1))

    wgt0, bgt0 = fuse(p["wg0"], p["wt0"], p["bg0"], p["bt0"])
    wgt1, bgt1 = fuse(p["wg1"], p["wt1"], p["bg1"], p["bt1"])
    return {
        "w_proj": pad_cols(p["w_proj"], H_pad).astype(bf),
        "wgt0": wgt0, "bgt0": bgt0,
        "wgt1": wgt1, "bgt1": bgt1,
        "hidden_size": H,
    }


def reference_forward(x, p):
    """Pure-JAX reference mirroring the kernel's numerics (bf16 matmul
    operands, f32 accumulation, f32 elementwise; eval mode: no dropout)."""
    bf = jnp.bfloat16
    h = jnp.dot(x.astype(bf), p["w_proj"].astype(bf),
                preferred_element_type=jnp.float32)
    for i in (0, 1):
        hb = h.astype(bf)
        g = jax.nn.sigmoid(
            jnp.dot(hb, p[f"wg{i}"].astype(bf),
                    preferred_element_type=jnp.float32) + p[f"bg{i}"])
        t = jnp.maximum(
            jnp.dot(hb, p[f"wt{i}"].astype(bf),
                    preferred_element_type=jnp.float32) + p[f"bt{i}"], 0.0)
        h = h + g * (t - h)
    return h


if __name__ == "__main__":
    key = jax.random.PRNGKey(0)
    k_x, k_p = jax.random.split(key)

    batch, seq = 2, 8
    embedding_size, hidden_size = 64, 32

    x = jax.random.normal(k_x, (batch, seq, embedding_size), jnp.float32)
    raw_params = init_params(k_p, embedding_size, hidden_size)
    packed_params = pack_params(raw_params)

    out = embedding_forward(x, packed_params)
    out = jax.block_until_ready(out)

    ref = reference_forward(x, raw_params)
    assert out.shape == (batch, seq, hidden_size), out.shape
    max_err = float(jnp.max(jnp.abs(out - ref)))
    assert jnp.allclose(out, ref, atol=2e-3, rtol=2e-3), max_err

    print("KERNEL_OK")
</pallas_src>

<mosaic_0001>
module attributes {stable_mosaic.version = 11 : i64} {
  func.func @_embedding_kernel(%arg0: i32, %arg1: memref<16x64xf32, #tpu.memory_space<vmem>>, %arg2: memref<64x128xbf16, #tpu.memory_space<vmem>>, %arg3: memref<128x256xbf16, #tpu.memory_space<vmem>>, %arg4: memref<1x256xf32, #tpu.memory_space<vmem>>, %arg5: memref<128x256xbf16, #tpu.memory_space<vmem>>, %arg6: memref<1x256xf32, #tpu.memory_space<vmem>>, %arg7: memref<16x128xf32, #tpu.memory_space<vmem>>) attributes {dimension_semantics = [#tpu.dimension_semantics<parallel>], iteration_bounds = array<i64: 1>, scalar_prefetch = 0 : i64, scratch_operands = 0 : i64, tpu.core_type = #tpu.core_type<tc>, window_params = [{transform_indices = @transform_0, window_bounds = array<i64: 16, 64>}, {pipeline_mode = #tpu.pipeline_mode<synchronous>, transform_indices = @transform_1, window_bounds = array<i64: 64, 128>}, {pipeline_mode = #tpu.pipeline_mode<synchronous>, transform_indices = @transform_2, window_bounds = array<i64: 128, 256>}, {pipeline_mode = #tpu.pipeline_mode<synchronous>, transform_indices = @transform_3, window_bounds = array<i64: 1, 256>}, {pipeline_mode = #tpu.pipeline_mode<synchronous>, transform_indices = @transform_4, window_bounds = array<i64: 128, 256>}, {pipeline_mode = #tpu.pipeline_mode<synchronous>, transform_indices = @transform_5, window_bounds = array<i64: 1, 256>}, {transform_indices = @transform_6, window_bounds = array<i64: 16, 128>}]} {
    %c0 = arith.constant 0 : index
    %c0_0 = arith.constant 0 : index
    %0 = vector.load %arg1[%c0, %c0_0] : memref<16x64xf32, #tpu.memory_space<vmem>>, vector<16x64xf32>
    %1 = arith.truncf %0 : vector<16x64xf32> to vector<16x64xbf16>
    %c0_1 = arith.constant 0 : index
    %c0_2 = arith.constant 0 : index
    %2 = vector.load %arg2[%c0_1, %c0_2] : memref<64x128xbf16, #tpu.memory_space<vmem>>, vector<64x128xbf16>
    %cst = arith.constant dense<0.000000e+00> : vector<16x128xf32>
    %3 = tpu.matmul %1, %2, %cst {dimension_numbers = #tpu.dot_dimension_numbers<[1], [0], [0], [1], [0, 0, 1, 1], [], []>} : vector<16x64xbf16>, vector<64x128xbf16>, vector<16x128xf32> -> vector<16x128xf32>
    %4 = arith.truncf %3 : vector<16x128xf32> to vector<16x128xbf16>
    %c0_3 = arith.constant 0 : index
    %c0_4 = arith.constant 0 : index
    %5 = vector.load %arg3[%c0_3, %c0_4] : memref<128x256xbf16, #tpu.memory_space<vmem>>, vector<128x256xbf16>
    %cst_5 = arith.constant dense<0.000000e+00> : vector<16x256xf32>
    %6 = tpu.matmul %4, %5, %cst_5 {dimension_numbers = #tpu.dot_dimension_numbers<[1], [0], [0], [1], [0, 0, 1, 1], [], []>} : vector<16x128xbf16>, vector<128x256xbf16>, vector<16x256xf32> -> vector<16x256xf32>
    %c0_6 = arith.constant 0 : index
    %c0_7 = arith.constant 0 : index
    %7 = vector.load %arg4[%c0_6, %c0_7] : memref<1x256xf32, #tpu.memory_space<vmem>>, vector<1x256xf32>
    %8 = vector.broadcast %7 : vector<1x256xf32> to vector<16x256xf32>
    %9 = arith.addf %6, %8 : vector<16x256xf32>
    %10 = vector.extract_strided_slice %9 {offsets = [0, 0], sizes = [16, 128], strides = [1, 1]} : vector<16x256xf32> to vector<16x128xf32>
    %11 = arith.negf %10 : vector<16x128xf32>
    %12 = math.exp %11 : vector<16x128xf32>
    %cst_8 = arith.constant 1.000000e+00 : f32
    %13 = vector.broadcast %cst_8 : f32 to vector<16x128xf32>
    %14 = arith.addf %13, %12 : vector<16x128xf32>
    %15 = arith.divf %13, %14 : vector<16x128xf32>
    %16 = vector.extract_strided_slice %9 {offsets = [0, 128], sizes = [16, 128], strides = [1, 1]} : vector<16x256xf32> to vector<16x128xf32>
    %cst_9 = arith.constant 0.000000e+00 : f32
    %17 = vector.broadcast %cst_9 : f32 to vector<16x128xf32>
    %18 = arith.maximumf %16, %17 : vector<16x128xf32>
    %19 = arith.subf %18, %3 : vector<16x128xf32>
    %20 = arith.mulf %15, %19 : vector<16x128xf32>
    %21 = arith.addf %3, %20 : vector<16x128xf32>
    %22 = arith.truncf %21 : vector<16x128xf32> to vector<16x128xbf16>
    %c0_10 = arith.constant 0 : index
    %c0_11 = arith.constant 0 : index
    %23 = vector.load %arg5[%c0_10, %c0_11] : memref<128x256xbf16, #tpu.memory_space<vmem>>, vector<128x256xbf16>
    %cst_12 = arith.constant dense<0.000000e+00> : vector<16x256xf32>
    %24 = tpu.matmul %22, %23, %cst_12 {dimension_numbers = #tpu.dot_dimension_numbers<[1], [0], [0], [1], [0, 0, 1, 1], [], []>} : vector<16x128xbf16>, vector<128x256xbf16>, vector<16x256xf32> -> vector<16x256xf32>
    %c0_13 = arith.constant 0 : index
    %c0_14 = arith.constant 0 : index
    %25 = vector.load %arg6[%c0_13, %c0_14] : memref<1x256xf32, #tpu.memory_space<vmem>>, vector<1x256xf32>
    %26 = vector.broadcast %25 : vector<1x256xf32> to vector<16x256xf32>
    %27 = arith.addf %24, %26 : vector<16x256xf32>
    %28 = vector.extract_strided_slice %27 {offsets = [0, 0], sizes = [16, 128], strides = [1, 1]} : vector<16x256xf32> to vector<16x128xf32>
    %29 = arith.negf %28 : vector<16x128xf32>
    %30 = math.exp %29 : vector<16x128xf32>
    %cst_15 = arith.constant 1.000000e+00 : f32
    %31 = vector.broadcast %cst_15 : f32 to vector<16x128xf32>
    %32 = arith.addf %31, %30 : vector<16x128xf32>
    %33 = arith.divf %31, %32 : vector<16x128xf32>
    %34 = vector.extract_strided_slice %27 {offsets = [0, 128], sizes = [16, 128], strides = [1, 1]} : vector<16x256xf32> to vector<16x128xf32>
    %cst_16 = arith.constant 0.000000e+00 : f32
    %35 = vector.broadcast %cst_16 : f32 to vector<16x128xf32>
    %36 = arith.maximumf %34, %35 : vector<16x128xf32>
    %37 = arith.subf %36, %21 : vector<16x128xf32>
    %38 = arith.mulf %33, %37 : vector<16x128xf32>
    %39 = arith.addf %21, %38 : vector<16x128xf32>
    %c0_17 = arith.constant 0 : index
    %c0_18 = arith.constant 0 : index
    %40 = vector.load %arg7[%c0_17, %c0_18] : memref<16x128xf32, #tpu.memory_space<vmem>>, vector<16x128xf32>
    tpu.vector_store %arg7[%c0_17, %c0_18], %39 {strides = array<i32>} : memref<16x128xf32, #tpu.memory_space<vmem>>, vector<16x128xf32>,
    return
  }
  func.func @transform_0(%arg0: i32) -> (i32, i32) {
    %c0_i32 = arith.constant 0 : i32
    %c0_i32_0 = arith.constant 0 : i32
    return %arg0, %c0_i32 : i32, i32
  }
  func.func @transform_1(%arg0: i32) -> (i32, i32) {
    %c0_i32 = arith.constant 0 : i32
    %c0_i32_0 = arith.constant 0 : i32
    %c0_i32_1 = arith.constant 0 : i32
    return %c0_i32, %c0_i32_0 : i32, i32
  }
  func.func @transform_2(%arg0: i32) -> (i32, i32) {
    %c0_i32 = arith.constant 0 : i32
    %c0_i32_0 = arith.constant 0 : i32
    %c0_i32_1 = arith.constant 0 : i32
    return %c0_i32, %c0_i32_0 : i32, i32
  }
  func.func @transform_3(%arg0: i32) -> (i32, i32) {
    %c0_i32 = arith.constant 0 : i32
    %c0_i32_0 = arith.constant 0 : i32
    %c0_i32_1 = arith.constant 0 : i32
    return %c0_i32, %c0_i32_0 : i32, i32
  }
  func.func @transform_4(%arg0: i32) -> (i32, i32) {
    %c0_i32 = arith.constant 0 : i32
    %c0_i32_0 = arith.constant 0 : i32
    %c0_i32_1 = arith.constant 0 : i32
    return %c0_i32, %c0_i32_0 : i32, i32
  }
  func.func @transform_5(%arg0: i32) -> (i32, i32) {
    %c0_i32 = arith.constant 0 : i32
    %c0_i32_0 = arith.constant 0 : i32
    %c0_i32_1 = arith.constant 0 : i32
    return %c0_i32, %c0_i32_0 : i32, i32
  }
  func.func @transform_6(%arg0: i32) -> (i32, i32) {
    %c0_i32 = arith.constant 0 : i32
    %c0_i32_0 = arith.constant 0 : i32
    return %arg0, %c0_i32 : i32, i32
  }
}

</mosaic_0001>

<llo_original>
// kernel: tpu_custom_call.1
$region0: #{tpu_custom_call.1}
  #allocation0 [shape = 'u32[]', space=smem, size = 0x4, offset = 0x4, fixed_abs, tag = 'smem constant byte address 0x4 - core index']
  #allocation1 [shape = 'u32[144,128]{1,0:T(1,128)}', space=vmem, size = 0x12000, scoped, tag = 'internal scratch']
  %s0 = inlined_call_operand.hbm [shape: f32[16,64], index: 0, kind: input, shape index: {}]
  %s1 = inlined_call_operand.hbm [shape: bf16[64,128], index: 1, kind: input, shape index: {}]
  %s2 = inlined_call_operand.hbm [shape: bf16[128,256], index: 2, kind: input, shape index: {}]
  %s3 = inlined_call_operand.vmem [shape: f32[1,256], index: 3, kind: input, shape index: {}]
  %s4 = inlined_call_operand.hbm [shape: bf16[128,256], index: 4, kind: input, shape index: {}]
  %s5 = inlined_call_operand.vmem [shape: f32[1,256], index: 5, kind: input, shape index: {}]
  %s6 = inlined_call_operand.hbm [shape: f32[16,128], index: 6, kind: output, shape index: {}]
  %s7 = sld [smem:[#allocation0]]
  $region50: #{tpu_custom_call.1} parent=0
    _
  %s9 = ssub.s32 1, %s7
  %s10 = scalar_select 0, %s9, %s7
  $region1: #{tpu_custom_call.1} parent=0
    #allocation2 [shape = 'u8[8192]{0}', space=vmem, size = 0x2000, scoped, tag = 'input window, operand 0, single buffered']
    #allocation3 [shape = 's32[1]{0}', space=sflag, size = 0x4, scoped, tag = 'scoped memory for tpu_custom_call.1']
    #allocation4 [shape = 's32[1]{0}', space=sflag, size = 0x4, scoped, tag = 'scoped memory for tpu_custom_call.1']
    #allocation5 [shape = 'u8[16384]{0}', space=vmem, size = 0x4000, scoped, tag = 'input window, operand 1, single buffered']
    #allocation6 [shape = 's32[1]{0}', space=sflag, size = 0x4, scoped, tag = 'scoped memory for tpu_custom_call.1']
    #allocation7 [shape = 'u8[65536]{0}', space=vmem, size = 0x10000, scoped, tag = 'input window, operand 2, single buffered']
    #allocation8 [shape = 'u8[65536]{0}', space=vmem, size = 0x10000, scoped, tag = 'input window, operand 4, single buffered']
    #allocation9 [shape = 's32[1]{0}', space=sflag, size = 0x4, scoped, tag = 'scoped memory for tpu_custom_call.1']
    #allocation10 [shape = 'u8[8192]{0}', space=vmem, size = 0x2000, scoped, tag = 'output window, operand 0, single buffered']
    %11 = vsyncpa [#allocation3], 0
    %12 = vsyncpa [#allocation6], 0
    %13 = vsyncpa [#allocation9], 0
    %14 = vsyncpa [#allocation4], 0
    // Predicated region
    $region2: #{tpu_custom_call.1} parent=1 // pred_check
      _
    $region3: #{tpu_custom_call.1} parent=1 // pred_check_branch
      %16 = sbr.rel (0) target = $region5
    $region4: #{tpu_custom_call.1} parent=1 // pred_region
      %s18 = ssub.s32 256, 256
      %19 = vsyncadd [#allocation3], %s18
      %s20 = sshll.u32 [#allocation2], 4
      %s21 = int_to_ptr.vmem [resolvable:$true] %s20
      %26 = dma.hbm_to_vmem [thread:$0]  %s0, 256, %s21, [#allocation3], 128, 128, 8
    $region5: #{tpu_custom_call.1} parent=1 // pred_fallthru
      _
    // Predicated region
    $region6: #{tpu_custom_call.1} parent=1 // pred_check
      _
    $region7: #{tpu_custom_call.1} parent=1 // pred_check_branch
      %28 = sbr.rel (0) target = $region9
    $region8: #{tpu_custom_call.1} parent=1 // pred_region
      %s30 = ssub.s32 512, 512
      %31 = vsyncadd [#allocation6], %s30
      %s32 = sshll.u32 [#allocation5], 4
      %s33 = int_to_ptr.vmem [resolvable:$true] %s32
      %38 = dma.hbm_to_vmem [thread:$0]  %s1, 512, %s33, [#allocation6], 64, 64, 4
    $region9: #{tpu_custom_call.1} parent=1 // pred_fallthru
      _
    // Predicated region
    $region10: #{tpu_custom_call.1} parent=1 // pred_check
      _
    $region11: #{tpu_custom_call.1} parent=1 // pred_check_branch
      %40 = sbr.rel (0) target = $region13
    $region12: #{tpu_custom_call.1} parent=1 // pred_region
      %s42 = ssub.s32 2048, 2048
      %43 = vsyncadd [#allocation6], %s42
      %s44 = sshll.u32 [#allocation7], 4
      %s45 = int_to_ptr.vmem [resolvable:$true] %s44
      %50 = dma.hbm_to_vmem [thread:$0]  %s2, 2048, %s45, [#allocation6], 128, 128, 8
    $region13: #{tpu_custom_call.1} parent=1 // pred_fallthru
      _
    // Predicated region
    $region14: #{tpu_custom_call.1} parent=1 // pred_check
      _
    $region15: #{tpu_custom_call.1} parent=1 // pred_check_branch
      %52 = sbr.rel (0) target = $region17
    $region16: #{tpu_custom_call.1} parent=1 // pred_region
      _
    $region17: #{tpu_custom_call.1} parent=1 // pred_fallthru
      _
    // Predicated region
    $region18: #{tpu_custom_call.1} parent=1 // pred_check
      _
    $region19: #{tpu_custom_call.1} parent=1 // pred_check_branch
      %54 = sbr.rel (0) target = $region21
    $region20: #{tpu_custom_call.1} parent=1 // pred_region
      %s56 = ssub.s32 2048, 2048
      %57 = vsyncadd [#allocation9], %s56
      %s58 = sshll.u32 [#allocation8], 4
      %s59 = int_to_ptr.vmem [resolvable:$true] %s58
      %64 = dma.hbm_to_vmem [thread:$0]  %s4, 2048, %s59, [#allocation9], 128, 128, 8
    $region21: #{tpu_custom_call.1} parent=1 // pred_fallthru
      _
    // Predicated region
    $region22: #{tpu_custom_call.1} parent=1 // pred_check
      _
    $region23: #{tpu_custom_call.1} parent=1 // pred_check_branch
      %66 = sbr.rel (0) target = $region25
    $region24: #{tpu_custom_call.1} parent=1 // pred_region
      _
    $region25: #{tpu_custom_call.1} parent=1 // pred_fallthru
      _
    // Predicated region
    $region26: #{tpu_custom_call.1} parent=1 // pred_check
      _
    $region27: #{tpu_custom_call.1} parent=1 // pred_check_branch
      %68 = sbr.rel (0) target = $region29
    $region28: #{tpu_custom_call.1} parent=1 // pred_region
      %69 = dma.done [#allocation3], 256
    $region29: #{tpu_custom_call.1} parent=1 // pred_fallthru
      _
    // Predicated region
    $region30: #{tpu_custom_call.1} parent=1 // pred_check
      _
    $region31: #{tpu_custom_call.1} parent=1 // pred_check_branch
      %71 = sbr.rel (0) target = $region33
    $region32: #{tpu_custom_call.1} parent=1 // pred_region
      %72 = dma.done [#allocation6], 512
    $region33: #{tpu_custom_call.1} parent=1 // pred_fallthru
      _
    // Predicated region
    $region34: #{tpu_custom_call.1} parent=1 // pred_check
      _
    $region35: #{tpu_custom_call.1} parent=1 // pred_check_branch
      %74 = sbr.rel (0) target = $region37
    $region36: #{tpu_custom_call.1} parent=1 // pred_region
      %75 = dma.done [#allocation6], 2048
    $region37: #{tpu_custom_call.1} parent=1 // pred_fallthru
      _
    // Predicated region
    $region38: #{tpu_custom_call.1} parent=1 // pred_check
      _
    $region39: #{tpu_custom_call.1} parent=1 // pred_check_branch
      %77 = sbr.rel (0) target = $region41
    $region40: #{tpu_custom_call.1} parent=1 // pred_region
      %78 = dma.done [#allocation9], 2048
    $region41: #{tpu_custom_call.1} parent=1 // pred_fallthru
      _
    %v80 = vld [vmem:[#allocation2] sm:$0xff]
    %v81 = vld [vmem:[#allocation2 + $0x8] sm:$0xff]
    %v82 = vpack.c.bf16 %v81, %v80
    %v83 = vld [vmem:[#allocation5] sm:$0xf]
    %v84 = vld [vmem:[#allocation5 + $0x4] sm:$0xf]
    %v85 = vld [vmem:[#allocation5 + $0x8] sm:$0xf]
    %v86 = vld [vmem:[#allocation5 + $0xc] sm:$0xf]
    %v87 = vld [vmem:[#allocation5 + $0x10] sm:$0xf]
    %v88 = vld [vmem:[#allocation5 + $0x14] sm:$0xf]
    %v89 = vld [vmem:[#allocation5 + $0x18] sm:$0xf]
    %v90 = vld [vmem:[#allocation5 + $0x1c] sm:$0xf]
    %v99 = vunpack.c.l.b16 %v83
    %v100 = vunpack.c.l.b16 %v84
    %v101 = vunpack.c.l.b16 %v85
    %v102 = vunpack.c.l.b16 %v86
    %v103 = vunpack.c.l.b16 %v87
    %v104 = vunpack.c.l.b16 %v88
    %v105 = vunpack.c.l.b16 %v89
    %v106 = vunpack.c.l.b16 %v90
    %v107 = vpack.c.b16 %v100, %v99
    %v108 = vpack.c.b16 %v102, %v101
    %v109 = vpack.c.b16 %v104, %v103
    %v110 = vpack.c.b16 %v106, %v105
    %vm115 = vcmask 523264
    %v117 = vsel %vm115, %v82, 0
    %119 = vmatprep.subr.bf16.mxu0 0
    %120 = vmatpush1.bf16.msra.mxu0 %v107
    %121 = vmatprep.subr.bf16.mxu0 0
    %122 = vmatpush1.bf16.msra.mxu0 %v108
    %123 = vmatprep.subr.bf16.mxu0 0
    %124 = vmatpush1.bf16.msra.mxu0 %v109
    %125 = vmatprep.subr.bf16.mxu0 0
    %126 = vmatpush1.bf16.msra.mxu0 %v110
    %127 = vmatprep.subr.bf16.mxu0 0
    %128 = vmatpush1.bf16.msra.mxu0 0
    %129 = vmatprep.subr.bf16.mxu0 0
    %130 = vmatpush1.bf16.msra.mxu0 0
    %131 = vmatprep.subr.bf16.mxu0 0
    %132 = vmatpush1.bf16.msra.mxu0 0
    %133 = vmatprep.subr.bf16.mxu0 0
    %134 = vmatpush1.bf16.msra.mxu0 0
    %135 = vmatprep.subr.bf16.mxu0 0
    %136 = vmatpush1.bf16.msra.mxu0 0
    %137 = vmatprep.subr.bf16.mxu0 0
    %138 = vmatpush1.bf16.msra.mxu0 0
    %139 = vmatprep.subr.bf16.mxu0 0
    %140 = vmatpush1.bf16.msra.mxu0 0
    %141 = vmatprep.subr.bf16.mxu0 0
    %142 = vmatpush1.bf16.msra.mxu0 0
    %143 = vmatprep.subr.bf16.mxu0 0
    %144 = vmatpush1.bf16.msra.mxu0 0
    %145 = vmatprep.subr.bf16.mxu0 0
    %146 = vmatpush1.bf16.msra.mxu0 0
    %147 = vmatprep.subr.bf16.mxu0 0
    %148 = vmatpush1.bf16.msra.mxu0 0
    %149 = vmatprep.subr.bf16.mxu0 0
    %150 = vmatpush1.bf16.msra.mxu0 0
    %151 = vmatprep.mubr.bf16.mxu0 0
    %152 = vmatmul.mubr.bf16.gmra.mrb[0].mxu0 %v117
    %v153 = vpop.f32.mrb[0].mxu0
    %v154 = vadd.f32 0.0, %v153
    %v155 = vpop.f32.mrb[0].mxu0
    %v156 = vpop.f32.mrb[0].mxu0
    %v157 = vadd.f32 0.0, %v156
    %v158 = vpop.f32.mrb[0].mxu0
    %159 = vdwg.mxu0
    %v160 = vpack.c.bf16 %v157, %v154
    %v161 = vld [vmem:[#allocation7] sm:$0xff]
    %v162 = vld [vmem:[#allocation7 + $0x8] sm:$0xff]
    %v163 = vld [vmem:[#allocation7 + $0x10] sm:$0xff]
    %v164 = vld [vmem:[#allocation7 + $0x18] sm:$0xff]
    %v165 = vld [vmem:[#allocation7 + $0x20] sm:$0xff]
    %v166 = vld [vmem:[#allocation7 + $0x28] sm:$0xff]
    %v167 = vld [vmem:[#allocation7 + $0x30] sm:$0xff]
    %v168 = vld [vmem:[#allocation7 + $0x38] sm:$0xff]
    %v169 = vld [vmem:[#allocation7 + $0x40] sm:$0xff]
    %v170 = vld [vmem:[#allocation7 + $0x48] sm:$0xff]
    %v171 = vld [vmem:[#allocation7 + $0x50] sm:$0xff]
    %v172 = vld [vmem:[#allocation7 + $0x58] sm:$0xff]
    %v173 = vld [vmem:[#allocation7 + $0x60] sm:$0xff]
    %v174 = vld [vmem:[#allocation7 + $0x68] sm:$0xff]
    %v175 = vld [vmem:[#allocation7 + $0x70] sm:$0xff]
    %v176 = vld [vmem:[#allocation7 + $0x78] sm:$0xff]
    %v177 = vld [vmem:[%s3] sm:$0x3]
    %v179 = vlaneseq
    %v180 = vshrl.u32 %v179, 7
    %v181 = vsub.s32 0, %v180
    %v182 = vrot.slane %v177, %v181
    %v183 = vlaneseq
    %v184 = vshrl.u32 %v183, 7
    %v185 = vsub.s32 1, %v184
    %v186 = vrot.slane %v177, %v185
    %v205 = vunpack.c.l.b16 %v161
    %v206 = vunpack.c.h.b16 %v161
    %v207 = vunpack.c.l.b16 %v162
    %v208 = vunpack.c.h.b16 %v162
    %v209 = vunpack.c.l.b16 %v163
    %v210 = vunpack.c.h.b16 %v163
    %v211 = vunpack.c.l.b16 %v164
    %v212 = vunpack.c.h.b16 %v164
    %v213 = vunpack.c.l.b16 %v165
    %v214 = vunpack.c.h.b16 %v165
    %v215 = vunpack.c.l.b16 %v166
    %v216 = vunpack.c.h.b16 %v166
    %v217 = vunpack.c.l.b16 %v167
    %v218 = vunpack.c.h.b16 %v167
    %v219 = vunpack.c.l.b16 %v168
    %v220 = vunpack.c.h.b16 %v168
    %v221 = vunpack.c.l.b16 %v169
    %v222 = vunpack.c.h.b16 %v169
    %v223 = vunpack.c.l.b16 %v170
    %v224 = vunpack.c.h.b16 %v170
    %v225 = vunpack.c.l.b16 %v171
    %v226 = vunpack.c.h.b16 %v171
    %v227 = vunpack.c.l.b16 %v172
    %v228 = vunpack.c.h.b16 %v172
    %v229 = vunpack.c.l.b16 %v173
    %v230 = vunpack.c.h.b16 %v173
    %v231 = vunpack.c.l.b16 %v174
    %v232 = vunpack.c.h.b16 %v174
    %v233 = vunpack.c.l.b16 %v175
    %v234 = vunpack.c.h.b16 %v175
    %v235 = vunpack.c.l.b16 %v176
    %v236 = vunpack.c.h.b16 %v176
    %v237 = vpack.c.b16 %v207, %v205
    %v238 = vpack.c.b16 %v208, %v206
    %v239 = vpack.c.b16 %v211, %v209
    %v240 = vpack.c.b16 %v212, %v210
    %v241 = vpack.c.b16 %v215, %v213
    %v242 = vpack.c.b16 %v216, %v214
    %v243 = vpack.c.b16 %v219, %v217
    %v244 = vpack.c.b16 %v220, %v218
    %v245 = vpack.c.b16 %v223, %v221
    %v246 = vpack.c.b16 %v224, %v222
    %v247 = vpack.c.b16 %v227, %v225
    %v248 = vpack.c.b16 %v228, %v226
    %v249 = vpack.c.b16 %v231, %v229
    %v250 = vpack.c.b16 %v232, %v230
    %v251 = vpack.c.b16 %v235, %v233
    %v252 = vpack.c.b16 %v236, %v234
    %269 = vmatprep.subr.bf16.mxu0 %v238
    %270 = vmatpush1.bf16.msra.mxu0 %v237
    %271 = vmatprep.subr.bf16.mxu0 %v240
    %272 = vmatpush1.bf16.msra.mxu0 %v239
    %273 = vmatprep.subr.bf16.mxu0 %v242
    %274 = vmatpush1.bf16.msra.mxu0 %v241
    %275 = vmatprep.subr.bf16.mxu0 %v244
    %276 = vmatpush1.bf16.msra.mxu0 %v243
    %277 = vmatprep.subr.bf16.mxu0 %v246
    %278 = vmatpush1.bf16.msra.mxu0 %v245
    %279 = vmatprep.subr.bf16.mxu0 %v248
    %280 = vmatpush1.bf16.msra.mxu0 %v247
    %281 = vmatprep.subr.bf16.mxu0 %v250
    %282 = vmatpush1.bf16.msra.mxu0 %v249
    %283 = vmatprep.subr.bf16.mxu0 %v252
    %284 = vmatpush1.bf16.msra.mxu0 %v251
    %285 = vmatprep.subr.bf16.mxu0 0
    %286 = vmatpush1.bf16.msra.mxu0 0
    %287 = vmatprep.subr.bf16.mxu0 0
    %288 = vmatpush1.bf16.msra.mxu0 0
    %289 = vmatprep.subr.bf16.mxu0 0
    %290 = vmatpush1.bf16.msra.mxu0 0
    %291 = vmatprep.subr.bf16.mxu0 0
    %292 = vmatpush1.bf16.msra.mxu0 0
    %293 = vmatprep.subr.bf16.mxu0 0
    %294 = vmatpush1.bf16.msra.mxu0 0
    %295 = vmatprep.subr.bf16.mxu0 0
    %296 = vmatpush1.bf16.msra.mxu0 0
    %297 = vmatprep.subr.bf16.mxu0 0
    %298 = vmatpush1.bf16.msra.mxu0 0
    %299 = vmatprep.subr.bf16.mxu0 0
    %300 = vmatpush1.bf16.msra.mxu0 0
    %301 = vmatprep.mubr.bf16.mxu0 0
    %302 = vmatmul.mubr.bf16.gmra.mrb[0].mxu0 %v160
    %v303 = vpop.f32.mrb[0].mxu0
    %v304 = vadd.f32 %v182, %v303
    %v305 = vpop.f32.mrb[0].mxu0
    %v306 = vadd.f32 %v186, %v305
    %v307 = vpop.f32.mrb[0].mxu0
    %v308 = vadd.f32 %v182, %v307
    %v309 = vpop.f32.mrb[0].mxu0
    %v310 = vadd.f32 %v186, %v309
    %311 = vdwg.mxu0
    %v312 = vxor.u32 %v304, 2147483648
    %v313 = vxor.u32 %v308, 2147483648
    %v314 = vmul.f32 %v312, 1.442695
    %v315 = vpow.pop %v314
    %v316 = vmul.f32 %v313, 1.442695
    %v317 = vpow.pop %v316
    %v318 = vadd.f32 %v315, 1.0
    %v319 = vadd.f32 %v317, 1.0
    %v320 = vrcp.pop %v318
    %v321 = vmul.f32 1.0, %v320
    %v322 = vrcp.pop %v319
    %v323 = vmul.f32 1.0, %v322
    %v324 = vmax.f32 %v306, 0.0
    %v325 = vmax.f32 %v310, 0.0
    %v326 = vsub.f32 %v324, %v154
    %v327 = vsub.f32 %v325, %v157
    %v328 = vmul.f32 %v321, %v326
    %v329 = vmul.f32 %v323, %v327
    %v330 = vadd.f32 %v154, %v328
    %v331 = vadd.f32 %v157, %v329
    %v332 = vpack.c.bf16 %v331, %v330
    %v333 = vld [vmem:[#allocation8] sm:$0xff]
    %v334 = vld [vmem:[#allocation8 + $0x8] sm:$0xff]
    %v335 = vld [vmem:[#allocation8 + $0x10] sm:$0xff]
    %v336 = vld [vmem:[#allocation8 + $0x18] sm:$0xff]
    %v337 = vld [vmem:[#allocation8 + $0x20] sm:$0xff]
    %v338 = vld [vmem:[#allocation8 + $0x28] sm:$0xff]
    %v339 = vld [vmem:[#allocation8 + $0x30] sm:$0xff]
    %v340 = vld [vmem:[#allocation8 + $0x38] sm:$0xff]
    %v341 = vld [vmem:[#allocation8 + $0x40] sm:$0xff]
    %v342 = vld [vmem:[#allocation8 + $0x48] sm:$0xff]
    %v343 = vld [vmem:[#allocation8 + $0x50] sm:$0xff]
    %v344 = vld [vmem:[#allocation8 + $0x58] sm:$0xff]
    %v345 = vld [vmem:[#allocation8 + $0x60] sm:$0xff]
    %v346 = vld [vmem:[#allocation8 + $0x68] sm:$0xff]
    %v347 = vld [vmem:[#allocation8 + $0x70] sm:$0xff]
    %v348 = vld [vmem:[#allocation8 + $0x78] sm:$0xff]
    %v349 = vld [vmem:[%s5] sm:$0x3]
    %v351 = vlaneseq
    %v352 = vshrl.u32 %v351, 7
    %v353 = vsub.s32 0, %v352
    %v354 = vrot.slane %v349, %v353
    %v355 = vlaneseq
    %v356 = vshrl.u32 %v355, 7
    %v357 = vsub.s32 1, %v356
    %v358 = vrot.slane %v349, %v357
    %v377 = vunpack.c.l.b16 %v333
    %v378 = vunpack.c.h.b16 %v333
    %v379 = vunpack.c.l.b16 %v334
    %v380 = vunpack.c.h.b16 %v334
    %v381 = vunpack.c.l.b16 %v335
    %v382 = vunpack.c.h.b16 %v335
    %v383 = vunpack.c.l.b16 %v336
    %v384 = vunpack.c.h.b16 %v336
    %v385 = vunpack.c.l.b16 %v337
    %v386 = vunpack.c.h.b16 %v337
    %v387 = vunpack.c.l.b16 %v338
    %v388 = vunpack.c.h.b16 %v338
    %v389 = vunpack.c.l.b16 %v339
    %v390 = vunpack.c.h.b16 %v339
    %v391 = vunpack.c.l.b16 %v340
    %v392 = vunpack.c.h.b16 %v340
    %v393 = vunpack.c.l.b16 %v341
    %v394 = vunpack.c.h.b16 %v341
    %v395 = vunpack.c.l.b16 %v342
    %v396 = vunpack.c.h.b16 %v342
    %v397 = vunpack.c.l.b16 %v343
    %v398 = vunpack.c.h.b16 %v343
    %v399 = vunpack.c.l.b16 %v344
    %v400 = vunpack.c.h.b16 %v344
    %v401 = vunpack.c.l.b16 %v345
    %v402 = vunpack.c.h.b16 %v345
    %v403 = vunpack.c.l.b16 %v346
    %v404 = vunpack.c.h.b16 %v346
    %v405 = vunpack.c.l.b16 %v347
    %v406 = vunpack.c.h.b16 %v347
    %v407 = vunpack.c.l.b16 %v348
    %v408 = vunpack.c.h.b16 %v348
    %v409 = vpack.c.b16 %v379, %v377
    %v410 = vpack.c.b16 %v380, %v378
    %v411 = vpack.c.b16 %v383, %v381
    %v412 = vpack.c.b16 %v384, %v382
    %v413 = vpack.c.b16 %v387, %v385
    %v414 = vpack.c.b16 %v388, %v386
    %v415 = vpack.c.b16 %v391, %v389
    %v416 = vpack.c.b16 %v392, %v390
    %v417 = vpack.c.b16 %v395, %v393
    %v418 = vpack.c.b16 %v396, %v394
    %v419 = vpack.c.b16 %v399, %v397
    %v420 = vpack.c.b16 %v400, %v398
    %v421 = vpack.c.b16 %v403, %v401
    %v422 = vpack.c.b16 %v404, %v402
    %v423 = vpack.c.b16 %v407, %v405
    %v424 = vpack.c.b16 %v408, %v406
    %441 = vmatprep.subr.bf16.mxu0 %v410
    %442 = vmatpush1.bf16.msra.mxu0 %v409
    %443 = vmatprep.subr.bf16.mxu0 %v412
    %444 = vmatpush1.bf16.msra.mxu0 %v411
    %445 = vmatprep.subr.bf16.mxu0 %v414
    %446 = vmatpush1.bf16.msra.mxu0 %v413
    %447 = vmatprep.subr.bf16.mxu0 %v416
    %448 = vmatpush1.bf16.msra.mxu0 %v415
    %449 = vmatprep.subr.bf16.mxu0 %v418
    %450 = vmatpush1.bf16.msra.mxu0 %v417
    %451 = vmatprep.subr.bf16.mxu0 %v420
    %452 = vmatpush1.bf16.msra.mxu0 %v419
    %453 = vmatprep.subr.bf16.mxu0 %v422
    %454 = vmatpush1.bf16.msra.mxu0 %v421
    %455 = vmatprep.subr.bf16.mxu0 %v424
    %456 = vmatpush1.bf16.msra.mxu0 %v423
    %457 = vmatprep.subr.bf16.mxu0 0
    %458 = vmatpush1.bf16.msra.mxu0 0
    %459 = vmatprep.subr.bf16.mxu0 0
    %460 = vmatpush1.bf16.msra.mxu0 0
    %461 = vmatprep.subr.bf16.mxu0 0
    %462 = vmatpush1.bf16.msra.mxu0 0
    %463 = vmatprep.subr.bf16.mxu0 0
    %464 = vmatpush1.bf16.msra.mxu0 0
    %465 = vmatprep.subr.bf16.mxu0 0
    %466 = vmatpush1.bf16.msra.mxu0 0
    %467 = vmatprep.subr.bf16.mxu0 0
    %468 = vmatpush1.bf16.msra.mxu0 0
    %469 = vmatprep.subr.bf16.mxu0 0
    %470 = vmatpush1.bf16.msra.mxu0 0
    %471 = vmatprep.subr.bf16.mxu0 0
    %472 = vmatpush1.bf16.msra.mxu0 0
    %473 = vmatprep.mubr.bf16.mxu0 0
    %474 = vmatmul.mubr.bf16.gmra.mrb[0].mxu0 %v332
    %v475 = vpop.f32.mrb[0].mxu0
    %v476 = vadd.f32 %v354, %v475
    %v477 = vpop.f32.mrb[0].mxu0
    %v478 = vadd.f32 %v358, %v477
    %v479 = vpop.f32.mrb[0].mxu0
    %v480 = vadd.f32 %v354, %v479
    %v481 = vpop.f32.mrb[0].mxu0
    %v482 = vadd.f32 %v358, %v481
    %483 = vdwg.mxu0
    %v484 = vxor.u32 %v476, 2147483648
    %v485 = vxor.u32 %v480, 2147483648
    %v486 = vmul.f32 %v484, 1.442695
    %v487 = vpow.pop %v486
    %v488 = vmul.f32 %v485, 1.442695
    %v489 = vpow.pop %v488
    %v490 = vadd.f32 %v487, 1.0
    %v491 = vadd.f32 %v489, 1.0
    %v492 = vrcp.pop %v490
    %v493 = vmul.f32 1.0, %v492
    %v494 = vrcp.pop %v491
    %v495 = vmul.f32 1.0, %v494
    %v496 = vmax.f32 %v478, 0.0
    %v497 = vmax.f32 %v482, 0.0
    %v498 = vsub.f32 %v496, %v330
    %v499 = vsub.f32 %v497, %v331
    %v500 = vmul.f32 %v493, %v498
    %v501 = vmul.f32 %v495, %v499
    %v502 = vadd.f32 %v330, %v500
    %v503 = vadd.f32 %v331, %v501
    %504 = vst [vmem:[#allocation10] sm:$0xff] %v502
    %505 = vst [vmem:[#allocation10 + $0x8] sm:$0xff] %v503
    // Predicated region
    $region42: #{tpu_custom_call.1} parent=1 // pred_check
      _
    $region43: #{tpu_custom_call.1} parent=1 // pred_check_branch
      %507 = sbr.rel (0) target = $region45
    $region44: #{tpu_custom_call.1} parent=1 // pred_region
      %s509 = ssub.s32 256, 256
      %510 = vsyncadd [#allocation4], %s509
      %s511 = sshll.u32 [#allocation10], 4
      %s512 = int_to_ptr.vmem [resolvable:$true] %s511
      %517 = dma.vmem_to_hbm [thread:$0]  %s512, 256, %s6, [#allocation4], 128, 128, 8
    $region45: #{tpu_custom_call.1} parent=1 // pred_fallthru
      _
    // Predicated region
    $region46: #{tpu_custom_call.1} parent=1 // pred_check
      _
    $region47: #{tpu_custom_call.1} parent=1 // pred_check_branch
      %519 = sbr.rel (0) target = $region49
    $region48: #{tpu_custom_call.1} parent=1 // pred_region
      %520 = dma.done [#allocation4], 256
    $region49: #{tpu_custom_call.1} parent=1 // pred_fallthru
      _
    %521 = vsyncpa [#allocation3], 1
    %522 = vsyncpa [#allocation6], 1
    %523 = vsyncpa [#allocation9], 1
    %524 = vsyncpa [#allocation4], 1

</llo_original>
